<compile_context>
chip_gen: v7x
topology: tpu7x:2x2x1
jax: 0.10.0
libtpu: 0.0.40
codegen_flags: <defaults>
</compile_context>

<pallas_src>
import math

import jax
import jax.numpy as jnp
from jax.experimental import pallas as pl
from jax.experimental.pallas import tpu as pltpu

_LANE = 128
_SUBLANE = 8


# ----------------------------------------------------------------------------
# TPU fast path: in-kernel hardware PRNG + cheapened dual-branch Box-Muller.
# ----------------------------------------------------------------------------
def _noise_kernel_tpu(seed_ref, x_ref, a_ref, o_ref):
    # Per-tile seed: multiplicative hash of the flat tile id so tiles get
    # well-separated (not consecutive) seeds for the hardware PRNG.
    tile_id = pl.program_id(0) * pl.num_programs(1) + pl.program_id(1)
    pltpu.prng_seed(
        seed_ref[0] + tile_id * jnp.int32(1103515245) + jnp.int32(12345)
    )

    tm, tn = x_ref.shape
    a = a_ref[...]  # (tm, 1) per-(batch, channel)-row scale

    one_exp = jnp.uint32(0x3F800000)  # sign/exponent bits of 1.0f
    two_pi = jnp.float32(2.0 * math.pi)
    neg_two = jnp.float32(-2.0)

    def _unit_float(bits):
        # Mantissa bit-trick: 23 high random bits into the mantissa of 1.0f
        # -> float in [1, 2); callers subtract to land in [0,1) / (0,1].
        return pltpu.bitcast(
            jnp.bitwise_or(jnp.right_shift(bits, 9), one_exp), jnp.float32
        )

    def _normals(shape, want_pair):
        """Return one (cos-branch) or two independent standard normals."""
        b1 = pltpu.bitcast(pltpu.prng_random_bits(shape), jnp.uint32)
        b2 = pltpu.bitcast(pltpu.prng_random_bits(shape), jnp.uint32)
        u1 = jnp.float32(2.0) - _unit_float(b1)       # (0, 1]  -> log-safe
        u2 = _unit_float(b2) - jnp.float32(1.0)       # [0, 1)
        r2 = neg_two * jnp.log(u1)                    # r^2
        r = jnp.sqrt(r2)
        z0 = r * jnp.cos(two_pi * u2)
        if not want_pair:
            return z0, None
        # Second normal without jnp.sin:  r*sin(theta) = +-sqrt(r^2 - z0^2),
        # with a random sign from a low bit already discarded when building
        # the uniform.  sign(sin) is independent of (|sin|, cos) for
        # theta ~ U[0, 2pi), so z1 is an exact standard normal, independent
        # of z0.
        sign = jnp.where(
            jnp.bitwise_and(b2, jnp.uint32(1)) > jnp.uint32(0),
            jnp.float32(1.0),
            jnp.float32(-1.0),
        )
        z1 = sign * jnp.sqrt(jnp.maximum(r2 - z0 * z0, jnp.float32(0.0)))
        return z0, z1

    # TODO(synk): on v6e/v7x doing the transform math in bf16 would roughly
    # halve VALU/EUP cost; kept a single f32 path so the kernel is also
    # correct on v5e (no bf16 VPU/EUP) without a chip-version switch.
    if tn % 256 == 0:
        # Dual branch split along the lane axis: both halves are multiples of
        # 128 lanes -> unmasked vector stores.
        half = tn // 2
        z0, z1 = _normals((tm, half), want_pair=True)
        a_b = jnp.broadcast_to(a, (tm, half))  # hoisted, reused by both halves
        o_ref[:, 0:half] = (x_ref[:, 0:half] + a_b * z0).astype(o_ref.dtype)
        o_ref[:, half:tn] = (x_ref[:, half:tn] + a_b * z1).astype(o_ref.dtype)
    elif tm % 16 == 0:
        # Dual branch split along the sublane axis (halves stay multiples of 8).
        half = tm // 2
        z0, z1 = _normals((half, tn), want_pair=True)
        o_ref[0:half, :] = (
            x_ref[0:half, :] + jnp.broadcast_to(a[0:half, :], (half, tn)) * z0
        ).astype(o_ref.dtype)
        o_ref[half:tm, :] = (
            x_ref[half:tm, :] + jnp.broadcast_to(a[half:tm, :], (half, tn)) * z1
        ).astype(o_ref.dtype)
    else:
        # Tiny / oddly shaped tile: single (cos) branch over the whole tile.
        z0, _ = _normals((tm, tn), want_pair=False)
        o_ref[...] = (
            x_ref[...] + jnp.broadcast_to(a, (tm, tn)) * z0
        ).astype(o_ref.dtype)


# ----------------------------------------------------------------------------
# Portable fallback (CPU / interpret mode): noise pre-generated outside.
# ----------------------------------------------------------------------------
def _noise_kernel_fused(x_ref, a_ref, n_ref, o_ref):
    o_ref[...] = (x_ref[...] + a_ref[...] * n_ref[...]).astype(o_ref.dtype)


def _pick_tiles(rows, cols, itemsize, target_bytes=2 << 20):
    """Pick a (tm, tn) block shape with ~target_bytes per block.

    Preference order:
      1. whole array in one block (small activations),
      2. full-width rows (tn = cols, lane-dense unmasked stores) with tm a
         multiple of 16 when possible (sublane-clean dual-branch row split),
      3. for very large H*W, column tiling: tm = 8 rows and tn a multiple of
         256 lanes (two clean 128-lane halves), bounding VMEM use and giving
         v7x megacore a second parallel axis.
    """
    if rows * cols * itemsize <= target_bytes:
        return rows, cols
    row_bytes = cols * itemsize
    if _SUBLANE * row_bytes <= target_bytes:
        tm = (target_bytes // row_bytes) // _SUBLANE * _SUBLANE
        tm = max(_SUBLANE, min(tm, rows))
        if tm >= 16:
            tm = (tm // 16) * 16
        return tm, cols
    tm = min(rows, _SUBLANE)
    tn = (target_bytes // max(1, tm * itemsize)) // 256 * 256
    tn = max(256, tn)
    max_tn = (cols // _LANE) * _LANE
    if max_tn >= 256:
        tn = min(tn, max_tn)
    return tm, tn


def noise_forward(x_nchw, a_c11, seed):
    """Pallas equivalent of Noise.forward.

    x_nchw : (N, C, H, W) float array
    a_c11  : (C, 1, 1)    per-channel scale (the nn.Parameter)
    seed   : python int   PRNG seed for the noise
    """
    N, C, H, W = x_nchw.shape
    rows, cols = N * C, H * W

    x2 = x_nchw.reshape(rows, cols)
    # One scale value per (batch, channel) row.
    a2 = (
        jnp.broadcast_to(a_c11.reshape(1, C, 1), (N, C, 1))
        .reshape(rows, 1)
        .astype(x_nchw.dtype)
    )

    tm, tn = _pick_tiles(rows, cols, jnp.dtype(x_nchw.dtype).itemsize)
    grid = (pl.cdiv(rows, tm), pl.cdiv(cols, tn))

    if jax.default_backend() == "tpu":
        seed_arr = jnp.asarray([seed], dtype=jnp.int32)
        out2 = pl.pallas_call(
            _noise_kernel_tpu,
            out_shape=jax.ShapeDtypeStruct((rows, cols), x_nchw.dtype),
            grid_spec=pltpu.PrefetchScalarGridSpec(
                num_scalar_prefetch=1,  # seed lands in SMEM before the grid
                grid=grid,
                in_specs=[
                    pl.BlockSpec((tm, tn), lambda i, j, seed_ref: (i, j)),
                    pl.BlockSpec((tm, 1), lambda i, j, seed_ref: (i, 0)),
                ],
                out_specs=pl.BlockSpec((tm, tn), lambda i, j, seed_ref: (i, j)),
            ),
            compiler_params=pltpu.CompilerParams(
                # Both axes are embarrassingly parallel -> megacore on v7x.
                dimension_semantics=("parallel", "parallel"),
                vmem_limit_bytes=32 * 1024 * 1024,
            ),
        )(seed_arr, x2, a2)
    else:
        # TODO(synk): the in-kernel HW-PRNG path has no lowering off-TPU; the
        # noise is pre-generated with jax.random and only the scale-add fused.
        key = jax.random.PRNGKey(seed)
        noise = jax.random.normal(key, (rows, cols), dtype=x_nchw.dtype)
        out2 = pl.pallas_call(
            _noise_kernel_fused,
            out_shape=jax.ShapeDtypeStruct((rows, cols), x_nchw.dtype),
            grid=grid,
            in_specs=[
                pl.BlockSpec((tm, tn), lambda i, j: (i, j)),
                pl.BlockSpec((tm, 1), lambda i, j: (i, 0)),
                pl.BlockSpec((tm, tn), lambda i, j: (i, j)),
            ],
            out_specs=pl.BlockSpec((tm, tn), lambda i, j: (i, j)),
        )(x2, a2, noise)

    return out2.reshape(N, C, H, W)


if __name__ == "__main__":
    key = jax.random.PRNGKey(0)
    N, C, H, W = 2, 4, 16, 16

    x = jax.random.normal(key, (N, C, H, W), dtype=jnp.float32)

    # Parameter initialization exactly as in Noise.__init__: zeros(ch, 1, 1).
    a = jnp.zeros((C, 1, 1), dtype=jnp.float32)

    out = jax.block_until_ready(noise_forward(x, a, seed=0))

    # With a == 0 the module is an identity (x + 0 * noise == x).
    assert out.shape == (N, C, H, W)
    assert jnp.allclose(out, x), "a=0 case must reproduce x exactly"

    # Exercise the noise path with a non-zero scale: output must differ from x
    # and stay finite.
    a_nz = jnp.full((C, 1, 1), 0.5, dtype=jnp.float32)
    out_nz = jax.block_until_ready(noise_forward(x, a_nz, seed=123))
    assert jnp.all(jnp.isfinite(out_nz))
    assert not jnp.allclose(out_nz, x)

    print("KERNEL_OK")
</pallas_src>

<mosaic_0001>
module attributes {stable_mosaic.version = 11 : i64} {
  func.func @_noise_kernel_fused(%arg0: i32, %arg1: i32, %arg2: memref<8x256xf32, #tpu.memory_space<vmem>>, %arg3: memref<8x1xf32, #tpu.memory_space<vmem>>, %arg4: memref<8x256xf32, #tpu.memory_space<vmem>>, %arg5: memref<8x256xf32, #tpu.memory_space<vmem>>) attributes {dimension_semantics = [#tpu.dimension_semantics<arbitrary>, #tpu.dimension_semantics<arbitrary>], iteration_bounds = array<i64: 1, 1>, scalar_prefetch = 0 : i64, scratch_operands = 0 : i64, tpu.core_type = #tpu.core_type<tc>, window_params = [{transform_indices = @transform_0, window_bounds = array<i64: 8, 256>}, {transform_indices = @transform_1, window_bounds = array<i64: 8, 1>}, {transform_indices = @transform_2, window_bounds = array<i64: 8, 256>}, {transform_indices = @transform_3, window_bounds = array<i64: 8, 256>}]} {
    %c0 = arith.constant 0 : index
    %c0_0 = arith.constant 0 : index
    %0 = vector.load %arg2[%c0, %c0_0] : memref<8x256xf32, #tpu.memory_space<vmem>>, vector<8x256xf32>
    %c0_1 = arith.constant 0 : index
    %c0_2 = arith.constant 0 : index
    %1 = vector.load %arg3[%c0_1, %c0_2] : memref<8x1xf32, #tpu.memory_space<vmem>>, vector<8x1xf32>
    %c0_3 = arith.constant 0 : index
    %c0_4 = arith.constant 0 : index
    %2 = vector.load %arg4[%c0_3, %c0_4] : memref<8x256xf32, #tpu.memory_space<vmem>>, vector<8x256xf32>
    %3 = vector.broadcast %1 : vector<8x1xf32> to vector<8x256xf32>
    %4 = arith.mulf %3, %2 : vector<8x256xf32>
    %5 = arith.addf %0, %4 : vector<8x256xf32>
    %c0_5 = arith.constant 0 : index
    %c0_6 = arith.constant 0 : index
    %6 = vector.load %arg5[%c0_5, %c0_6] : memref<8x256xf32, #tpu.memory_space<vmem>>, vector<8x256xf32>
    tpu.vector_store %arg5[%c0_5, %c0_6], %5 {strides = array<i32>} : memref<8x256xf32, #tpu.memory_space<vmem>>, vector<8x256xf32>,
    return
  }
  func.func @transform_0(%arg0: i32, %arg1: i32) -> (i32, i32) {
    %c0_i32 = arith.constant 0 : i32
    return %arg0, %arg1 : i32, i32
  }
  func.func @transform_1(%arg0: i32, %arg1: i32) -> (i32, i32) {
    %c0_i32 = arith.constant 0 : i32
    %c0_i32_0 = arith.constant 0 : i32
    return %arg0, %c0_i32 : i32, i32
  }
  func.func @transform_2(%arg0: i32, %arg1: i32) -> (i32, i32) {
    %c0_i32 = arith.constant 0 : i32
    return %arg0, %arg1 : i32, i32
  }
  func.func @transform_3(%arg0: i32, %arg1: i32) -> (i32, i32) {
    %c0_i32 = arith.constant 0 : i32
    return %arg0, %arg1 : i32, i32
  }
}

</mosaic_0001>

<llo_original>
// kernel: tpu_custom_call.1
$region0: #{tpu_custom_call.1}
  #allocation0 [shape = 'u32[]', space=smem, size = 0x4, offset = 0x4, fixed_abs, tag = 'smem constant byte address 0x4 - core index']
  #allocation1 [shape = 'u32[144,128]{1,0:T(1,128)}', space=vmem, size = 0x12000, scoped, tag = 'internal scratch']
  %s0 = inlined_call_operand.hbm [shape: f32[8,256], index: 0, kind: input, shape index: {}]
  %s1 = inlined_call_operand.vmem [shape: f32[8,1], index: 1, kind: input, shape index: {}]
  %s2 = inlined_call_operand.vmem [shape: f32[8,256], index: 2, kind: input, shape index: {}]
  %s3 = inlined_call_operand.hbm [shape: f32[8,256], index: 3, kind: output, shape index: {}]
  %s4 = sld [smem:[#allocation0]]
  $region26: #{tpu_custom_call.1} parent=0
    _
  %s6 = ssub.s32 1, %s4
  %s7 = scalar_select 0, %s6, %s4
  $region1: #{tpu_custom_call.1} parent=0
    #allocation2 [shape = 'u8[8192]{0}', space=vmem, size = 0x2000, scoped, tag = 'input window, operand 0, single buffered']
    #allocation3 [shape = 's32[1]{0}', space=sflag, size = 0x4, scoped, tag = 'scoped memory for tpu_custom_call.1']
    #allocation4 [shape = 's32[1]{0}', space=sflag, size = 0x4, scoped, tag = 'scoped memory for tpu_custom_call.1']
    #allocation5 [shape = 'u8[8192]{0}', space=vmem, size = 0x2000, scoped, tag = 'output window, operand 0, single buffered']
    %8 = vsyncpa [#allocation3], 0
    %9 = vsyncpa [#allocation4], 0
    // Predicated region
    $region2: #{tpu_custom_call.1} parent=1 // pred_check
      _
    $region3: #{tpu_custom_call.1} parent=1 // pred_check_branch
      %11 = sbr.rel (0) target = $region5
    $region4: #{tpu_custom_call.1} parent=1 // pred_region
      %s13 = ssub.s32 256, 256
      %14 = vsyncadd [#allocation3], %s13
      %s16 = sshll.u32 [#allocation2], 4
      %s17 = int_to_ptr.vmem [resolvable:$true] %s16
      %19 = dma.hbm_to_vmem [thread:$0]  %s0, 256, %s17, [#allocation3]
    $region5: #{tpu_custom_call.1} parent=1 // pred_fallthru
      _
    // Predicated region
    $region6: #{tpu_custom_call.1} parent=1 // pred_check
      _
    $region7: #{tpu_custom_call.1} parent=1 // pred_check_branch
      %21 = sbr.rel (0) target = $region9
    $region8: #{tpu_custom_call.1} parent=1 // pred_region
      _
    $region9: #{tpu_custom_call.1} parent=1 // pred_fallthru
      _
    // Predicated region
    $region10: #{tpu_custom_call.1} parent=1 // pred_check
      _
    $region11: #{tpu_custom_call.1} parent=1 // pred_check_branch
      %23 = sbr.rel (0) target = $region13
    $region12: #{tpu_custom_call.1} parent=1 // pred_region
      _
    $region13: #{tpu_custom_call.1} parent=1 // pred_fallthru
      _
    // Predicated region
    $region14: #{tpu_custom_call.1} parent=1 // pred_check
      _
    $region15: #{tpu_custom_call.1} parent=1 // pred_check_branch
      %25 = sbr.rel (0) target = $region17
    $region16: #{tpu_custom_call.1} parent=1 // pred_region
      %26 = dma.done [#allocation3], 256
    $region17: #{tpu_custom_call.1} parent=1 // pred_fallthru
      _
    %v27 = vld [vmem:[#allocation2] sm:$0xff]
    %v28 = vld [vmem:[#allocation2 + $0x8] sm:$0xff]
    %v29 = vld [vmem:[%s1] sm:$0xff]
    %v30 = vld [vmem:[%s2] sm:$0xff]
    %v31 = vld [vmem:[%s2 + $0x8] sm:$0xff]
    %33 = vset.pattern.permute.xlu0 0
    %34 = vperm.xlu0 %33, %v29
    %v35 = vpop.permute.xlu0 %34
    %v37 = vmul.f32 %v35, %v30
    %v38 = vmul.f32 %v35, %v31
    %v39 = vadd.f32 %v27, %v37
    %v40 = vadd.f32 %v28, %v38
    %41 = vst [vmem:[#allocation5] sm:$0xff] %v39
    %42 = vst [vmem:[#allocation5 + $0x8] sm:$0xff] %v40
    // Predicated region
    $region18: #{tpu_custom_call.1} parent=1 // pred_check
      _
    $region19: #{tpu_custom_call.1} parent=1 // pred_check_branch
      %44 = sbr.rel (0) target = $region21
    $region20: #{tpu_custom_call.1} parent=1 // pred_region
      %s46 = ssub.s32 256, 256
      %47 = vsyncadd [#allocation4], %s46
      %s49 = sshll.u32 [#allocation5], 4
      %s50 = int_to_ptr.vmem [resolvable:$true] %s49
      %52 = dma.vmem_to_hbm [thread:$0]  %s50, 256, %s3, [#allocation4]
    $region21: #{tpu_custom_call.1} parent=1 // pred_fallthru
      _
    // Predicated region
    $region22: #{tpu_custom_call.1} parent=1 // pred_check
      _
    $region23: #{tpu_custom_call.1} parent=1 // pred_check_branch
      %54 = sbr.rel (0) target = $region25
    $region24: #{tpu_custom_call.1} parent=1 // pred_region
      %55 = dma.done [#allocation4], 256
    $region25: #{tpu_custom_call.1} parent=1 // pred_fallthru
      _
    %56 = vsyncpa [#allocation3], 1
    %57 = vsyncpa [#allocation4], 1

</llo_original>
